<compile_context>
chip_gen: v6e
topology: v6e:2x2x1
jax: 0.10.0
libtpu: 0.0.40
codegen_flags: <defaults>
</compile_context>

<pallas_src>
import jax
import jax.numpy as jnp
from jax.experimental import pallas as pl
from jax.experimental.pallas import tpu as pltpu


def _round_up(x, m):
    return ((x + m - 1) // m) * m


def _critic_kernel(x_ref, w1_ref, b1_ref, w2_ref, b2_ref, w3_ref, o_ref):
    # Layer 1: single merged bf16 x bf16 matmul, f32 accumulation on the MXU.
    h1 = jnp.dot(x_ref[...], w1_ref[...], preferred_element_type=jnp.float32)
    h1 = jnp.maximum(h1 + b1_ref[...], 0.0)                       # (tb, U0) f32

    # Layer 2: cast activation to bf16 for the bf16-native MXU path.
    h2 = jnp.dot(h1.astype(jnp.bfloat16), w2_ref[...],
                 preferred_element_type=jnp.float32)
    h2 = jnp.maximum(h2 + b2_ref[...], 0.0)                       # (tb, U1) f32

    # Layer 3 (N=1 head): contract w3 (1, U1) against h2 (tb, U1) on its last
    # dim (transposed-rhs dot_general) so the result lands directly as a
    # lane-dense (1, tb) row -- no masked column stores, no relayout.
    v = jax.lax.dot_general(
        w3_ref[...], h2,
        dimension_numbers=(((1,), (1,)), ((), ())),
        preferred_element_type=jnp.float32)                       # (1, tb)
    o_ref[...] = v.astype(o_ref.dtype)


def critic_forward(states, actions, params, *, batch_tile=128):
    """states: (B, S), actions: (B, A) -> values: (B,)"""
    B, S = states.shape
    A = actions.shape[1]
    K = S + A
    U0 = params["w1"].shape[1]
    U1 = params["w2"].shape[1]

    # Merge layer-1 inputs in the wrapper: one contiguous bf16 feature tile.
    feats = jnp.concatenate([states, actions], axis=1).astype(jnp.bfloat16)

    w1 = params["w1"].astype(jnp.bfloat16)                        # (K,  U0)
    w2 = params["w2"].astype(jnp.bfloat16)                        # (U0, U1)
    b1 = params["b1"].reshape(1, U0).astype(jnp.float32)
    b2 = params["b2"].reshape(1, U1).astype(jnp.float32)
    w3 = params["w3"].reshape(1, U1).astype(jnp.float32)
    b3 = params["b3"].reshape(()).astype(jnp.float32)             # added post-call

    # Tile selection: at most `batch_tile` rows per tile, rounded up to the
    # bf16 sublane group (16) -> padding <= ~one sublane group per tile, and
    # B > batch_tile automatically yields >=2 grid steps (megacore sharding).
    n = -(-B // batch_tile)                 # number of batch tiles
    tb = _round_up(-(-B // n), 16)          # rows per tile
    Bp = n * tb
    if Bp != B:
        feats = jnp.pad(feats, ((0, Bp - B), (0, 0)))

    const = lambda arr: pl.BlockSpec(arr.shape, lambda i: (0, 0))

    flops = 2 * Bp * (K * U0 + U0 * U1 + U1)
    bytes_accessed = (
        2 * (feats.size + w1.size + w2.size)                      # bf16
        + 4 * (b1.size + b2.size + w3.size + Bp)                  # f32
    )

    out = pl.pallas_call(
        _critic_kernel,
        out_shape=jax.ShapeDtypeStruct((n, 1, tb), jnp.float32),
        grid=(n,),
        in_specs=[
            pl.BlockSpec((tb, K), lambda i: (i, 0)),              # activations
            const(w1), const(b1),                                 # VMEM-resident
            const(w2), const(b2),
            const(w3),
        ],
        # Lane-dense per-tile row; leading tile dim squeezed out of the ref.
        out_specs=pl.BlockSpec((None, 1, tb), lambda i: (i, 0, 0)),
        compiler_params=pltpu.CompilerParams(
            dimension_semantics=("parallel",)),
        cost_estimate=pl.CostEstimate(
            flops=int(flops), transcendentals=0,
            bytes_accessed=int(bytes_accessed)),
    )(feats, w1, b1, w2, b2, w3)

    # glue: l3 bias + torch.squeeze(values, -1) + drop batch padding.
    return out.reshape(Bp)[:B] + b3


def init_critic_params(key, state_dim, action_dim, units=(400, 300)):
    """Deterministic init mimicking nn.Linear default: U(-1/sqrt(fan_in), +)."""
    dims_in = (state_dim + action_dim, units[0], units[1])
    dims_out = (units[0], units[1], 1)
    params = {}
    for i, (din, dout) in enumerate(zip(dims_in, dims_out), start=1):
        key, kw, kb = jax.random.split(key, 3)
        bound = 1.0 / jnp.sqrt(jnp.float32(din))
        # stored as (in, out): transpose of PyTorch's (out, in) weight
        params[f"w{i}"] = jax.random.uniform(
            kw, (din, dout), jnp.float32, -bound, bound)
        params[f"b{i}"] = jax.random.uniform(
            kb, (1, dout), jnp.float32, -bound, bound)
    return params


if __name__ == "__main__":
    key = jax.random.PRNGKey(0)
    k_params, k_s, k_a = jax.random.split(key, 3)

    batch, state_dim, action_dim = 8, 17, 6
    units = (400, 300)

    params = init_critic_params(k_params, state_dim, action_dim, units)
    states = jax.random.normal(k_s, (batch, state_dim), jnp.float32)
    actions = jax.random.normal(k_a, (batch, action_dim), jnp.float32)

    values = critic_forward(states, actions, params)
    values = jax.block_until_ready(values)

    # Pure-JAX reference using the same bf16-rounded weights/activations as
    # the kernel (only accumulation order differs).  NOTE: bf16 rounding is a
    # deliberate deviation (~1e-2) from the f32 PyTorch reference.
    f32 = jnp.float32
    x = jnp.concatenate([states, actions], axis=1)
    x = x.astype(jnp.bfloat16).astype(f32)
    w1_bf = params["w1"].astype(jnp.bfloat16).astype(f32)
    w2_bf = params["w2"].astype(jnp.bfloat16).astype(f32)
    h = jnp.maximum(x @ w1_bf + params["b1"], 0.0)
    h = jnp.maximum(h.astype(jnp.bfloat16).astype(f32) @ w2_bf
                    + params["b2"], 0.0)
    ref = jnp.squeeze(h @ params["w3"] + params["b3"], -1)

    assert values.shape == (batch,)
    assert jnp.allclose(values, ref, atol=1e-2, rtol=1e-2)

    print("KERNEL_OK")
</pallas_src>

<mosaic_0001>
module attributes {stable_mosaic.version = 11 : i64} {
  func.func @_critic_kernel(%arg0: i32, %arg1: memref<16x23xbf16, #tpu.memory_space<vmem>>, %arg2: memref<23x400xbf16, #tpu.memory_space<vmem>>, %arg3: memref<1x400xf32, #tpu.memory_space<vmem>>, %arg4: memref<400x300xbf16, #tpu.memory_space<vmem>>, %arg5: memref<1x300xf32, #tpu.memory_space<vmem>>, %arg6: memref<1x300xf32, #tpu.memory_space<vmem>>, %arg7: memref<1x1x16xf32, #tpu.memory_space<vmem>>) attributes {dimension_semantics = [#tpu.dimension_semantics<parallel>], iteration_bounds = array<i64: 1>, scalar_prefetch = 0 : i64, scratch_operands = 0 : i64, tpu.core_type = #tpu.core_type<tc>, window_params = [{transform_indices = @transform_0, window_bounds = array<i64: 16, 23>}, {pipeline_mode = #tpu.pipeline_mode<synchronous>, transform_indices = @transform_1, window_bounds = array<i64: 23, 400>}, {pipeline_mode = #tpu.pipeline_mode<synchronous>, transform_indices = @transform_2, window_bounds = array<i64: 1, 400>}, {pipeline_mode = #tpu.pipeline_mode<synchronous>, transform_indices = @transform_3, window_bounds = array<i64: 400, 300>}, {pipeline_mode = #tpu.pipeline_mode<synchronous>, transform_indices = @transform_4, window_bounds = array<i64: 1, 300>}, {pipeline_mode = #tpu.pipeline_mode<synchronous>, transform_indices = @transform_5, window_bounds = array<i64: 1, 300>}, {transform_indices = @transform_6, window_bounds = array<i64: 1, 1, 16>}]} {
    %c0 = arith.constant 0 : index
    %c0_0 = arith.constant 0 : index
    %0 = vector.load %arg1[%c0, %c0_0] : memref<16x23xbf16, #tpu.memory_space<vmem>>, vector<16x23xbf16>
    %c0_1 = arith.constant 0 : index
    %c0_2 = arith.constant 0 : index
    %1 = vector.load %arg2[%c0_1, %c0_2] : memref<23x400xbf16, #tpu.memory_space<vmem>>, vector<23x400xbf16>
    %cst = arith.constant dense<0.000000e+00> : vector<16x400xf32>
    %2 = tpu.matmul %0, %1, %cst {dimension_numbers = #tpu.dot_dimension_numbers<[1], [0], [0], [1], [0, 0, 1, 1], [], []>} : vector<16x23xbf16>, vector<23x400xbf16>, vector<16x400xf32> -> vector<16x400xf32>
    %c0_3 = arith.constant 0 : index
    %c0_4 = arith.constant 0 : index
    %3 = vector.load %arg3[%c0_3, %c0_4] : memref<1x400xf32, #tpu.memory_space<vmem>>, vector<1x400xf32>
    %4 = vector.broadcast %3 : vector<1x400xf32> to vector<16x400xf32>
    %5 = arith.addf %2, %4 : vector<16x400xf32>
    %cst_5 = arith.constant 0.000000e+00 : f32
    %6 = vector.broadcast %cst_5 : f32 to vector<16x400xf32>
    %7 = arith.maximumf %5, %6 : vector<16x400xf32>
    %8 = arith.truncf %7 : vector<16x400xf32> to vector<16x400xbf16>
    %c0_6 = arith.constant 0 : index
    %c0_7 = arith.constant 0 : index
    %9 = vector.load %arg4[%c0_6, %c0_7] : memref<400x300xbf16, #tpu.memory_space<vmem>>, vector<400x300xbf16>
    %cst_8 = arith.constant dense<0.000000e+00> : vector<16x300xf32>
    %10 = tpu.matmul %8, %9, %cst_8 {dimension_numbers = #tpu.dot_dimension_numbers<[1], [0], [0], [1], [0, 0, 1, 1], [], []>} : vector<16x400xbf16>, vector<400x300xbf16>, vector<16x300xf32> -> vector<16x300xf32>
    %c0_9 = arith.constant 0 : index
    %c0_10 = arith.constant 0 : index
    %11 = vector.load %arg5[%c0_9, %c0_10] : memref<1x300xf32, #tpu.memory_space<vmem>>, vector<1x300xf32>
    %12 = vector.broadcast %11 : vector<1x300xf32> to vector<16x300xf32>
    %13 = arith.addf %10, %12 : vector<16x300xf32>
    %cst_11 = arith.constant 0.000000e+00 : f32
    %14 = vector.broadcast %cst_11 : f32 to vector<16x300xf32>
    %15 = arith.maximumf %13, %14 : vector<16x300xf32>
    %c0_12 = arith.constant 0 : index
    %c0_13 = arith.constant 0 : index
    %16 = vector.load %arg6[%c0_12, %c0_13] : memref<1x300xf32, #tpu.memory_space<vmem>>, vector<1x300xf32>
    %cst_14 = arith.constant dense<0.000000e+00> : vector<1x16xf32>
    %17 = tpu.matmul %16, %15, %cst_14 {dimension_numbers = #tpu.dot_dimension_numbers<[1], [1], [0], [0], [0, 0, 1, 0], [], []>} : vector<1x300xf32>, vector<16x300xf32>, vector<1x16xf32> -> vector<1x16xf32>
    %c0_15 = arith.constant 0 : index
    %c0_16 = arith.constant 0 : index
    %c0_17 = arith.constant 0 : index
    %18 = vector.load %arg7[%c0_15, %c0_16, %c0_17] : memref<1x1x16xf32, #tpu.memory_space<vmem>>, vector<1x1x16xf32>
    %19 = vector.shape_cast %18 : vector<1x1x16xf32> to vector<1x16xf32>
    %20 = vector.shape_cast %17 : vector<1x16xf32> to vector<1x1x16xf32>
    tpu.vector_store %arg7[%c0_15, %c0_16, %c0_17], %20 {strides = array<i32>} : memref<1x1x16xf32, #tpu.memory_space<vmem>>, vector<1x1x16xf32>,
    return
  }
  func.func @transform_0(%arg0: i32) -> (i32, i32) {
    %c0_i32 = arith.constant 0 : i32
    %c0_i32_0 = arith.constant 0 : i32
    return %arg0, %c0_i32 : i32, i32
  }
  func.func @transform_1(%arg0: i32) -> (i32, i32) {
    %c0_i32 = arith.constant 0 : i32
    %c0_i32_0 = arith.constant 0 : i32
    %c0_i32_1 = arith.constant 0 : i32
    return %c0_i32, %c0_i32_0 : i32, i32
  }
  func.func @transform_2(%arg0: i32) -> (i32, i32) {
    %c0_i32 = arith.constant 0 : i32
    %c0_i32_0 = arith.constant 0 : i32
    %c0_i32_1 = arith.constant 0 : i32
    return %c0_i32, %c0_i32_0 : i32, i32
  }
  func.func @transform_3(%arg0: i32) -> (i32, i32) {
    %c0_i32 = arith.constant 0 : i32
    %c0_i32_0 = arith.constant 0 : i32
    %c0_i32_1 = arith.constant 0 : i32
    return %c0_i32, %c0_i32_0 : i32, i32
  }
  func.func @transform_4(%arg0: i32) -> (i32, i32) {
    %c0_i32 = arith.constant 0 : i32
    %c0_i32_0 = arith.constant 0 : i32
    %c0_i32_1 = arith.constant 0 : i32
    return %c0_i32, %c0_i32_0 : i32, i32
  }
  func.func @transform_5(%arg0: i32) -> (i32, i32) {
    %c0_i32 = arith.constant 0 : i32
    %c0_i32_0 = arith.constant 0 : i32
    %c0_i32_1 = arith.constant 0 : i32
    return %c0_i32, %c0_i32_0 : i32, i32
  }
  func.func @transform_6(%arg0: i32) -> (i32, i32, i32) {
    %c0_i32 = arith.constant 0 : i32
    %c0_i32_0 = arith.constant 0 : i32
    %c0_i32_1 = arith.constant 0 : i32
    return %arg0, %c0_i32, %c0_i32_0 : i32, i32, i32
  }
}

</mosaic_0001>

<llo_original>
// kernel: tpu_custom_call.1
$region0: #{tpu_custom_call.1}
  #allocation0 [shape = 'u32[]', space=smem, size = 0x4, offset = 0x4, fixed_abs, tag = 'smem constant byte address 0x4 - core index']
  #allocation1 [shape = 'u32[144,128]{1,0:T(1,128)}', space=vmem, size = 0x12000, scoped, tag = 'internal scratch']
  %s0 = inlined_call_operand.hbm [shape: bf16[16,23], index: 0, kind: input, shape index: {}]
  %s1 = inlined_call_operand.hbm [shape: bf16[23,400], index: 1, kind: input, shape index: {}]
  %s2 = inlined_call_operand.hbm [shape: f32[1,400], index: 2, kind: input, shape index: {}]
  %s3 = inlined_call_operand.hbm [shape: bf16[400,300], index: 3, kind: input, shape index: {}]
  %s4 = inlined_call_operand.vmem [shape: f32[1,300], index: 4, kind: input, shape index: {}]
  %s5 = inlined_call_operand.vmem [shape: f32[1,300], index: 5, kind: input, shape index: {}]
  %s6 = inlined_call_operand.hbm [shape: f32[1,1,16], index: 6, kind: output, shape index: {}]
  %s7 = sld [smem:[#allocation0]]
  $region50: #{tpu_custom_call.1} parent=0
    _
  %s9 = ssub.s32 1, %s7
  %s10 = scalar_select 0, %s9, %s7
  $region1: #{tpu_custom_call.1} parent=0
    #allocation2 [shape = 'u8[4096]{0}', space=vmem, size = 0x1000, scoped, tag = 'input window, operand 0, single buffered']
    #allocation3 [shape = 's32[1]{0}', space=sflag, size = 0x4, scoped, tag = 'scoped memory for tpu_custom_call.1']
    #allocation4 [shape = 's32[1]{0}', space=sflag, size = 0x4, scoped, tag = 'scoped memory for tpu_custom_call.1']
    #allocation5 [shape = 'u8[24576]{0}', space=vmem, size = 0x6000, scoped, tag = 'input window, operand 1, single buffered']
    #allocation6 [shape = 's32[1]{0}', space=sflag, size = 0x4, scoped, tag = 'scoped memory for tpu_custom_call.1']
    #allocation7 [shape = 'u8[2048]{0}', space=vmem, size = 0x800, scoped, tag = 'input window, operand 2, single buffered']
    #allocation8 [shape = 'u8[307200]{0}', space=vmem, size = 0x4b000, scoped, tag = 'input window, operand 3, single buffered']
    #allocation9 [shape = 's32[1]{0}', space=sflag, size = 0x4, scoped, tag = 'scoped memory for tpu_custom_call.1']
    #allocation10 [shape = 'u8[512]{0}', space=vmem, size = 0x400, scoped, tag = 'output window, operand 0, single buffered']
    %11 = vsyncpa [#allocation3], 0
    %12 = vsyncpa [#allocation6], 0
    %13 = vsyncpa [#allocation9], 0
    %14 = vsyncpa [#allocation4], 0
    // Predicated region
    $region2: #{tpu_custom_call.1} parent=1 // pred_check
      _
    $region3: #{tpu_custom_call.1} parent=1 // pred_check_branch
      %16 = sbr.rel (0) target = $region5
    $region4: #{tpu_custom_call.1} parent=1 // pred_region
      %s18 = ssub.s32 128, 128
      %19 = vsyncadd [#allocation3], %s18
      %s20 = sshll.u32 [#allocation2], 4
      %s21 = int_to_ptr.vmem [resolvable:$true] %s20
      %26 = dma.hbm_to_vmem [thread:$0]  %s0, 128, %s21, [#allocation3], 64, 64, 4
    $region5: #{tpu_custom_call.1} parent=1 // pred_fallthru
      _
    // Predicated region
    $region6: #{tpu_custom_call.1} parent=1 // pred_check
      _
    $region7: #{tpu_custom_call.1} parent=1 // pred_check_branch
      %28 = sbr.rel (0) target = $region9
    $region8: #{tpu_custom_call.1} parent=1 // pred_region
      %s30 = ssub.s32 768, 768
      %31 = vsyncadd [#allocation6], %s30
      %s32 = sshll.u32 [#allocation5], 4
      %s33 = int_to_ptr.vmem [resolvable:$true] %s32
      %38 = dma.hbm_to_vmem [thread:$0]  %s1, 768, %s33, [#allocation6], 256, 256, 16
    $region9: #{tpu_custom_call.1} parent=1 // pred_fallthru
      _
    // Predicated region
    $region10: #{tpu_custom_call.1} parent=1 // pred_check
      _
    $region11: #{tpu_custom_call.1} parent=1 // pred_check_branch
      %40 = sbr.rel (0) target = $region13
    $region12: #{tpu_custom_call.1} parent=1 // pred_region
      %s42 = ssub.s32 64, 64
      %43 = vsyncadd [#allocation6], %s42
      %s45 = sshll.u32 [#allocation7], 4
      %s46 = int_to_ptr.vmem [resolvable:$true] %s45
      %48 = dma.hbm_to_vmem [thread:$0]  %s2, 64, %s46, [#allocation6]
    $region13: #{tpu_custom_call.1} parent=1 // pred_fallthru
      _
    // Predicated region
    $region14: #{tpu_custom_call.1} parent=1 // pred_check
      _
    $region15: #{tpu_custom_call.1} parent=1 // pred_check_branch
      %50 = sbr.rel (0) target = $region17
    $region16: #{tpu_custom_call.1} parent=1 // pred_region
      %s52 = ssub.s32 9600, 9600
      %53 = vsyncadd [#allocation9], %s52
      %s54 = sshll.u32 [#allocation8], 4
      %s55 = int_to_ptr.vmem [resolvable:$true] %s54
      %60 = dma.hbm_to_vmem [thread:$0]  %s3, 9600, %s55, [#allocation9], 192, 192, 12
    $region17: #{tpu_custom_call.1} parent=1 // pred_fallthru
      _
    // Predicated region
    $region18: #{tpu_custom_call.1} parent=1 // pred_check
      _
    $region19: #{tpu_custom_call.1} parent=1 // pred_check_branch
      %62 = sbr.rel (0) target = $region21
    $region20: #{tpu_custom_call.1} parent=1 // pred_region
      _
    $region21: #{tpu_custom_call.1} parent=1 // pred_fallthru
      _
    // Predicated region
    $region22: #{tpu_custom_call.1} parent=1 // pred_check
      _
    $region23: #{tpu_custom_call.1} parent=1 // pred_check_branch
      %64 = sbr.rel (0) target = $region25
    $region24: #{tpu_custom_call.1} parent=1 // pred_region
      _
    $region25: #{tpu_custom_call.1} parent=1 // pred_fallthru
      _
    // Predicated region
    $region26: #{tpu_custom_call.1} parent=1 // pred_check
      _
    $region27: #{tpu_custom_call.1} parent=1 // pred_check_branch
      %66 = sbr.rel (0) target = $region29
    $region28: #{tpu_custom_call.1} parent=1 // pred_region
      %67 = dma.done [#allocation3], 128
    $region29: #{tpu_custom_call.1} parent=1 // pred_fallthru
      _
    // Predicated region
    $region30: #{tpu_custom_call.1} parent=1 // pred_check
      _
    $region31: #{tpu_custom_call.1} parent=1 // pred_check_branch
      %69 = sbr.rel (0) target = $region33
    $region32: #{tpu_custom_call.1} parent=1 // pred_region
      %70 = dma.done [#allocation6], 768
    $region33: #{tpu_custom_call.1} parent=1 // pred_fallthru
      _
    // Predicated region
    $region34: #{tpu_custom_call.1} parent=1 // pred_check
      _
    $region35: #{tpu_custom_call.1} parent=1 // pred_check_branch
      %72 = sbr.rel (0) target = $region37
    $region36: #{tpu_custom_call.1} parent=1 // pred_region
      %73 = dma.done [#allocation6], 64
    $region37: #{tpu_custom_call.1} parent=1 // pred_fallthru
      _
    // Predicated region
    $region38: #{tpu_custom_call.1} parent=1 // pred_check
      _
    $region39: #{tpu_custom_call.1} parent=1 // pred_check_branch
      %75 = sbr.rel (0) target = $region41
    $region40: #{tpu_custom_call.1} parent=1 // pred_region
      %76 = dma.done [#allocation9], 9600
    $region41: #{tpu_custom_call.1} parent=1 // pred_fallthru
      _
    %v78 = vld [vmem:[#allocation2] sm:$0xf]
    %v79 = vld [vmem:[#allocation2 + $0x4] sm:$0xf]
    %v80 = vld [vmem:[#allocation5] sm:$0xff]
    %v81 = vld [vmem:[#allocation5 + $0x8] sm:$0xff]
    %v82 = vld [vmem:[#allocation5 + $0x10] sm:$0xff]
    %v83 = vld [vmem:[#allocation5 + $0x18] sm:$0xff]
    %v84 = vld [vmem:[#allocation5 + $0x20] sm:$0xff]
    %v85 = vld [vmem:[#allocation5 + $0x28] sm:$0xff]
    %v86 = vld [vmem:[#allocation7] sm:$0xf]
    %v88 = vlaneseq
    %v89 = vshrl.u32 %v88, 7
    %v90 = vsub.s32 0, %v89
    %v91 = vrot.slane %v86, %v90
    %v92 = vlaneseq
    %v93 = vshrl.u32 %v92, 7
    %v94 = vsub.s32 1, %v93
    %v95 = vrot.slane %v86, %v94
    %v96 = vlaneseq
    %v97 = vshrl.u32 %v96, 7
    %v98 = vsub.s32 2, %v97
    %v99 = vrot.slane %v86, %v98
    %v100 = vlaneseq
    %v101 = vshrl.u32 %v100, 7
    %v102 = vsub.s32 3, %v101
    %v103 = vrot.slane %v86, %v102
    %v110 = vunpack.c.l.b16 %v78
    %v111 = vunpack.c.l.b16 %v79
    %v112 = vpack.c.b16 %v111, %v110
    %v119 = vunpack.c.l.b16 %v80
    %v120 = vunpack.c.h.b16 %v80
    %v121 = vunpack.c.l.b16 %v81
    %v122 = vunpack.c.h.b16 %v81
    %v123 = vunpack.c.l.b16 %v82
    %v124 = vunpack.c.h.b16 %v82
    %v125 = vunpack.c.l.b16 %v83
    %v126 = vunpack.c.h.b16 %v83
    %v127 = vunpack.c.l.b16 %v84
    %v128 = vunpack.c.h.b16 %v84
    %v129 = vunpack.c.l.b16 %v85
    %v130 = vunpack.c.h.b16 %v85
    %v131 = vpack.c.b16 %v123, %v119
    %v132 = vpack.c.b16 %v124, %v120
    %v133 = vpack.c.b16 %v125, %v121
    %v134 = vpack.c.b16 %v126, %v122
    %v135 = vpack.c.b16 %v127, %v127
    %v136 = vpack.c.b16 %v128, %v128
    %v137 = vpack.c.b16 %v129, %v129
    %v138 = vpack.c.b16 %v130, %v130
    %vm143 = vcmask 187392
    %v145 = vsel %vm143, %v112, 0
    %vm147 = vcmask 1042432
    %vm148 = vcmask 1043456
    %v149 = vsel %vm147, 4294967295, 65535
    %v150 = vsel %vm148, %v149, 0
    %v152 = vand.u32 %v135, %v150
    %v155 = vand.u32 %v136, %v150
    %v158 = vand.u32 %v137, %v150
    %v161 = vand.u32 %v138, %v150
    %163 = vmatprep.subr.bf16.mxu0 0
    %164 = vmatpush1.bf16.msra.mxu0 0
    %165 = vmatprep.subr.bf16.mxu0 0
    %166 = vmatpush1.bf16.msra.mxu0 0
    %167 = vmatprep.subr.bf16.mxu0 0
    %168 = vmatpush1.bf16.msra.mxu0 0
    %169 = vmatprep.subr.bf16.mxu0 0
    %170 = vmatpush1.bf16.msra.mxu0 0
    %171 = vmatprep.subr.bf16.mxu0 0
    %172 = vmatpush1.bf16.msra.mxu0 0
    %173 = vmatprep.subr.bf16.mxu0 0
    %174 = vmatpush1.bf16.msra.mxu0 0
    %175 = vmatprep.subr.bf16.mxu0 %v155
    %176 = vmatpush1.bf16.msra.mxu0 %v152
    %177 = vmatprep.subr.bf16.mxu0 %v132
    %178 = vmatpush1.bf16.msra.mxu0 %v131
    %179 = vmatprep.subr.bf16.mxu0 0
    %180 = vmatpush2.bf16.msra.mxu0 0
    %181 = vmatprep.subr.bf16.mxu0 0
    %182 = vmatpush2.bf16.msra.mxu0 0
    %183 = vmatprep.subr.bf16.mxu0 0
    %184 = vmatpush2.bf16.msra.mxu0 0
    %185 = vmatprep.subr.bf16.mxu0 0
    %186 = vmatpush2.bf16.msra.mxu0 0
    %187 = vmatprep.subr.bf16.mxu0 0
    %188 = vmatpush2.bf16.msra.mxu0 0
    %189 = vmatprep.subr.bf16.mxu0 0
    %190 = vmatpush2.bf16.msra.mxu0 0
    %191 = vmatprep.subr.bf16.mxu0 0
    %192 = vmatpush2.bf16.msra.mxu0 0
    %193 = vmatprep.subr.bf16.mxu0 0
    %194 = vmatpush2.bf16.msra.mxu0 0
    %195 = vmatprep.mubr.bf16.mxu0 0
    %196 = vmatmul.mubr.bf16.gmra.mxu0 %v145
    %v197 = vpop.f32.mrf.mxu0
    %v198 = vadd.f32 %v91, %v197
    %v199 = vpop.f32.mrf.mxu0
    %v200 = vadd.f32 %v95, %v199
    %v201 = vpop.f32.mrf.mxu0
    %v202 = vadd.f32 %v91, %v201
    %v203 = vpop.f32.mrf.mxu0
    %v204 = vadd.f32 %v95, %v203
    %205 = vdwg.mxu0
    %206 = vmatprep.subr.bf16.mxu0 0
    %207 = vmatpush1.bf16.msra.mxu0 0
    %208 = vmatprep.subr.bf16.mxu0 0
    %209 = vmatpush1.bf16.msra.mxu0 0
    %210 = vmatprep.subr.bf16.mxu0 0
    %211 = vmatpush1.bf16.msra.mxu0 0
    %212 = vmatprep.subr.bf16.mxu0 0
    %213 = vmatpush1.bf16.msra.mxu0 0
    %214 = vmatprep.subr.bf16.mxu0 0
    %215 = vmatpush1.bf16.msra.mxu0 0
    %216 = vmatprep.subr.bf16.mxu0 0
    %217 = vmatpush1.bf16.msra.mxu0 0
    %218 = vmatprep.subr.bf16.mxu0 %v161
    %219 = vmatpush1.bf16.msra.mxu0 %v158
    %220 = vmatprep.subr.bf16.mxu0 %v134
    %221 = vmatpush1.bf16.msra.mxu0 %v133
    %222 = vmatprep.subr.bf16.mxu0 0
    %223 = vmatpush2.bf16.msra.mxu0 0
    %224 = vmatprep.subr.bf16.mxu0 0
    %225 = vmatpush2.bf16.msra.mxu0 0
    %226 = vmatprep.subr.bf16.mxu0 0
    %227 = vmatpush2.bf16.msra.mxu0 0
    %228 = vmatprep.subr.bf16.mxu0 0
    %229 = vmatpush2.bf16.msra.mxu0 0
    %230 = vmatprep.subr.bf16.mxu0 0
    %231 = vmatpush2.bf16.msra.mxu0 0
    %232 = vmatprep.subr.bf16.mxu0 0
    %233 = vmatpush2.bf16.msra.mxu0 0
    %234 = vmatprep.subr.bf16.mxu0 0
    %235 = vmatpush2.bf16.msra.mxu0 0
    %236 = vmatprep.subr.bf16.mxu0 0
    %237 = vmatpush2.bf16.msra.mxu0 0
    %238 = vmatprep.mubr.bf16.mxu0 0
    %239 = vmatmul.mubr.bf16.gmra.mxu0 %v145
    %v240 = vpop.f32.mrf.mxu0
    %v241 = vadd.f32 %v99, %v240
    %v242 = vpop.f32.mrf.mxu0
    %v243 = vadd.f32 %v103, %v242
    %v244 = vpop.f32.mrf.mxu0
    %v245 = vadd.f32 %v99, %v244
    %v246 = vpop.f32.mrf.mxu0
    %v247 = vadd.f32 %v103, %v246
    %248 = vdwg.mxu0
    %v249 = vmax.f32 %v198, 0.0
    %v250 = vmax.f32 %v200, 0.0
    %v251 = vmax.f32 %v241, 0.0
    %v252 = vmax.f32 %v243, 0.0
    %v253 = vmax.f32 %v202, 0.0
    %v254 = vmax.f32 %v204, 0.0
    %v255 = vmax.f32 %v245, 0.0
    %v256 = vmax.f32 %v247, 0.0
    %v257 = vpack.c.bf16 %v253, %v249
    %v258 = vpack.c.bf16 %v254, %v250
    %v259 = vpack.c.bf16 %v255, %v251
    %v260 = vpack.c.bf16 %v256, %v252
    %v261 = vld [vmem:[#allocation8] sm:$0xff]
    %v262 = vld [vmem:[#allocation8 + $0x8] sm:$0xf]
    %v263 = vld [vmem:[#allocation8 + $0xc] sm:$0xff]
    %v264 = vld [vmem:[#allocation8 + $0x14] sm:$0xf]
    %v265 = vld [vmem:[#allocation8 + $0x18] sm:$0xff]
    %v266 = vld [vmem:[#allocation8 + $0x20] sm:$0xf]
    %v267 = vld [vmem:[#allocation8 + $0x24] sm:$0xff]
    %v268 = vld [vmem:[#allocation8 + $0x2c] sm:$0xf]
    %v269 = vld [vmem:[#allocation8 + $0x30] sm:$0xff]
    %v270 = vld [vmem:[#allocation8 + $0x38] sm:$0xf]
    %v271 = vld [vmem:[#allocation8 + $0x3c] sm:$0xff]
    %v272 = vld [vmem:[#allocation8 + $0x44] sm:$0xf]
    %v273 = vld [vmem:[#allocation8 + $0x48] sm:$0xff]
    %v274 = vld [vmem:[#allocation8 + $0x50] sm:$0xf]
    %v275 = vld [vmem:[#allocation8 + $0x54] sm:$0xff]
    %v276 = vld [vmem:[#allocation8 + $0x5c] sm:$0xf]
    %v277 = vld [vmem:[#allocation8 + $0x60] sm:$0xff]
    %v278 = vld [vmem:[#allocation8 + $0x68] sm:$0xf]
    %v279 = vld [vmem:[#allocation8 + $0x6c] sm:$0xff]
    %v280 = vld [vmem:[#allocation8 + $0x74] sm:$0xf]
    %v281 = vld [vmem:[#allocation8 + $0x78] sm:$0xff]
    %v282 = vld [vmem:[#allocation8 + $0x80] sm:$0xf]
    %v283 = vld [vmem:[#allocation8 + $0x84] sm:$0xff]
    %v284 = vld [vmem:[#allocation8 + $0x8c] sm:$0xf]
    %v285 = vld [vmem:[#allocation8 + $0x90] sm:$0xff]
    %v286 = vld [vmem:[#allocation8 + $0x98] sm:$0xf]
    %v287 = vld [vmem:[#allocation8 + $0x9c] sm:$0xff]
    %v288 = vld [vmem:[#allocation8 + $0xa4] sm:$0xf]
    %v289 = vld [vmem:[#allocation8 + $0xa8] sm:$0xff]
    %v290 = vld [vmem:[#allocation8 + $0xb0] sm:$0xf]
    %v291 = vld [vmem:[#allocation8 + $0xb4] sm:$0xff]
    %v292 = vld [vmem:[#allocation8 + $0xbc] sm:$0xf]
    %v293 = vld [vmem:[#allocation8 + $0xc0] sm:$0xff]
    %v294 = vld [vmem:[#allocation8 + $0xc8] sm:$0xf]
    %v295 = vld [vmem:[#allocation8 + $0xcc] sm:$0xff]
    %v296 = vld [vmem:[#allocation8 + $0xd4] sm:$0xf]
    %v297 = vld [vmem:[#allocation8 + $0xd8] sm:$0xff]
    %v298 = vld [vmem:[#allocation8 + $0xe0] sm:$0xf]
    %v299 = vld [vmem:[#allocation8 + $0xe4] sm:$0xff]
    %v300 = vld [vmem:[#allocation8 + $0xec] sm:$0xf]
    %v301 = vld [vmem:[#allocation8 + $0xf0] sm:$0xff]
    %v302 = vld [vmem:[#allocation8 + $0xf8] sm:$0xf]
    %v303 = vld [vmem:[#allocation8 + $0xfc] sm:$0xff]
    %v304 = vld [vmem:[#allocation8 + $0x104] sm:$0xf]
    %v305 = vld [vmem:[#allocation8 + $0x108] sm:$0xff]
    %v306 = vld [vmem:[#allocation8 + $0x110] sm:$0xf]
    %v307 = vld [vmem:[#allocation8 + $0x114] sm:$0xff]
    %v308 = vld [vmem:[#allocation8 + $0x11c] sm:$0xf]
    %v309 = vld [vmem:[#allocation8 + $0x120] sm:$0xff]
    %v310 = vld [vmem:[#allocation8 + $0x128] sm:$0xf]
    %v311 = vld [vmem:[#allocation8 + $0x12c] sm:$0xff]
    %v312 = vld [vmem:[#allocation8 + $0x134] sm:$0xf]
    %v313 = vld [vmem:[#allocation8 + $0x138] sm:$0xff]
    %v314 = vld [vmem:[#allocation8 + $0x140] sm:$0xf]
    %v315 = vld [vmem:[#allocation8 + $0x144] sm:$0xff]
    %v316 = vld [vmem:[#allocation8 + $0x14c] sm:$0xf]
    %v317 = vld [vmem:[#allocation8 + $0x150] sm:$0xff]
    %v318 = vld [vmem:[#allocation8 + $0x158] sm:$0xf]
    %v319 = vld [vmem:[#allocation8 + $0x15c] sm:$0xff]
    %v320 = vld [vmem:[#allocation8 + $0x164] sm:$0xf]
    %v321 = vld [vmem:[#allocation8 + $0x168] sm:$0xff]
    %v322 = vld [vmem:[#allocation8 + $0x170] sm:$0xf]
    %v323 = vld [vmem:[#allocation8 + $0x174] sm:$0xff]
    %v324 = vld [vmem:[#allocation8 + $0x17c] sm:$0xf]
    %v325 = vld [vmem:[#allocation8 + $0x180] sm:$0xff]
    %v326 = vld [vmem:[#allocation8 + $0x188] sm:$0xf]
    %v327 = vld [vmem:[#allocation8 + $0x18c] sm:$0xff]
    %v328 = vld [vmem:[#allocation8 + $0x194] sm:$0xf]
    %v329 = vld [vmem:[#allocation8 + $0x198] sm:$0xff]
    %v330 = vld [vmem:[#allocation8 + $0x1a0] sm:$0xf]
    %v331 = vld [vmem:[#allocation8 + $0x1a4] sm:$0xff]
    %v332 = vld [vmem:[#allocation8 + $0x1ac] sm:$0xf]
    %v333 = vld [vmem:[#allocation8 + $0x1b0] sm:$0xff]
    %v334 = vld [vmem:[#allocation8 + $0x1b8] sm:$0xf]
    %v335 = vld [vmem:[#allocation8 + $0x1bc] sm:$0xff]
    %v336 = vld [vmem:[#allocation8 + $0x1c4] sm:$0xf]
    %v337 = vld [vmem:[#allocation8 + $0x1c8] sm:$0xff]
    %v338 = vld [vmem:[#allocation8 + $0x1d0] sm:$0xf]
    %v339 = vld [vmem:[#allocation8 + $0x1d4] sm:$0xff]
    %v340 = vld [vmem:[#allocation8 + $0x1dc] sm:$0xf]
    %v341 = vld [vmem:[#allocation8 + $0x1e0] sm:$0xff]
    %v342 = vld [vmem:[#allocation8 + $0x1e8] sm:$0xf]
    %v343 = vld [vmem:[#allocation8 + $0x1ec] sm:$0xff]
    %v344 = vld [vmem:[#allocation8 + $0x1f4] sm:$0xf]
    %v345 = vld [vmem:[#allocation8 + $0x1f8] sm:$0xff]
    %v346 = vld [vmem:[#allocation8 + $0x200] sm:$0xf]
    %v347 = vld [vmem:[#allocation8 + $0x204] sm:$0xff]
    %v348 = vld [vmem:[#allocation8 + $0x20c] sm:$0xf]
    %v349 = vld [vmem:[#allocation8 + $0x210] sm:$0xff]
    %v350 = vld [vmem:[#allocation8 + $0x218] sm:$0xf]
    %v351 = vld [vmem:[#allocation8 + $0x21c] sm:$0xff]
    %v352 = vld [vmem:[#allocation8 + $0x224] sm:$0xf]
    %v353 = vld [vmem:[#allocation8 + $0x228] sm:$0xff]
    %v354 = vld [vmem:[#allocation8 + $0x230] sm:$0xf]
    %v355 = vld [vmem:[#allocation8 + $0x234] sm:$0xff]
    %v356 = vld [vmem:[#allocation8 + $0x23c] sm:$0xf]
    %v357 = vld [vmem:[#allocation8 + $0x240] sm:$0xff]
    %v358 = vld [vmem:[#allocation8 + $0x248] sm:$0xf]
    %v359 = vld [vmem:[#allocation8 + $0x24c] sm:$0xff]
    %v360 = vld [vmem:[#allocation8 + $0x254] sm:$0xf]
    %v361 = vld [vmem:[%s4] sm:$0x7]
    %v363 = vlaneseq
    %v364 = vshrl.u32 %v363, 7
    %v365 = vsub.s32 0, %v364
    %v366 = vrot.slane %v361, %v365
    %v367 = vlaneseq
    %v368 = vshrl.u32 %v367, 7
    %v369 = vsub.s32 1, %v368
    %v370 = vrot.slane %v361, %v369
    %v371 = vlaneseq
    %v372 = vshrl.u32 %v371, 7
    %v373 = vsub.s32 2, %v372
    %v374 = vrot.slane %v361, %v373
    %v478 = vunpack.c.l.b16 %v261
    %v479 = vunpack.c.h.b16 %v261
    %v480 = vunpack.c.l.b16 %v262
    %v481 = vunpack.c.l.b16 %v263
    %v482 = vunpack.c.h.b16 %v263
    %v483 = vunpack.c.l.b16 %v264
    %v484 = vunpack.c.l.b16 %v265
    %v485 = vunpack.c.h.b16 %v265
    %v486 = vunpack.c.l.b16 %v266
    %v487 = vunpack.c.l.b16 %v267
    %v488 = vunpack.c.h.b16 %v267
    %v489 = vunpack.c.l.b16 %v268
    %v490 = vunpack.c.l.b16 %v269
    %v491 = vunpack.c.h.b16 %v269
    %v492 = vunpack.c.l.b16 %v270
    %v493 = vunpack.c.l.b16 %v271
    %v494 = vunpack.c.h.b16 %v271
    %v495 = vunpack.c.l.b16 %v272
    %v496 = vunpack.c.l.b16 %v273
    %v497 = vunpack.c.h.b16 %v273
    %v498 = vunpack.c.l.b16 %v274
    %v499 = vunpack.c.l.b16 %v275
    %v500 = vunpack.c.h.b16 %v275
    %v501 = vunpack.c.l.b16 %v276
    %v502 = vunpack.c.l.b16 %v277
    %v503 = vunpack.c.h.b16 %v277
    %v504 = vunpack.c.l.b16 %v278
    %v505 = vunpack.c.l.b16 %v279
    %v506 = vunpack.c.h.b16 %v279
    %v507 = vunpack.c.l.b16 %v280
    %v508 = vunpack.c.l.b16 %v281
    %v509 = vunpack.c.h.b16 %v281
    %v510 = vunpack.c.l.b16 %v282
    %v511 = vunpack.c.l.b16 %v283
    %v512 = vunpack.c.h.b16 %v283
    %v513 = vunpack.c.l.b16 %v284
    %v514 = vunpack.c.l.b16 %v285
    %v515 = vunpack.c.h.b16 %v285
    %v516 = vunpack.c.l.b16 %v286
    %v517 = vunpack.c.l.b16 %v287
    %v518 = vunpack.c.h.b16 %v287
    %v519 = vunpack.c.l.b16 %v288
    %v520 = vunpack.c.l.b16 %v289
    %v521 = vunpack.c.h.b16 %v289
    %v522 = vunpack.c.l.b16 %v290
    %v523 = vunpack.c.l.b16 %v291
    %v524 = vunpack.c.h.b16 %v291
    %v525 = vunpack.c.l.b16 %v292
    %v526 = vunpack.c.l.b16 %v293
    %v527 = vunpack.c.h.b16 %v293
    %v528 = vunpack.c.l.b16 %v294
    %v529 = vunpack.c.l.b16 %v295
    %v530 = vunpack.c.h.b16 %v295
    %v531 = vunpack.c.l.b16 %v296
    %v532 = vunpack.c.l.b16 %v297
    %v533 = vunpack.c.h.b16 %v297
    %v534 = vunpack.c.l.b16 %v298
    %v535 = vunpack.c.l.b16 %v299
    %v536 = vunpack.c.h.b16 %v299
    %v537 = vunpack.c.l.b16 %v300
    %v538 = vunpack.c.l.b16 %v301
    %v539 = vunpack.c.h.b16 %v301
    %v540 = vunpack.c.l.b16 %v302
    %v541 = vunpack.c.l.b16 %v303
    %v542 = vunpack.c.h.b16 %v303
    %v543 = vunpack.c.l.b16 %v304
    %v544 = vunpack.c.l.b16 %v305
    %v545 = vunpack.c.h.b16 %v305
    %v546 = vunpack.c.l.b16 %v306
    %v547 = vunpack.c.l.b16 %v307
    %v548 = vunpack.c.h.b16 %v307
    %v549 = vunpack.c.l.b16 %v308
    %v550 = vunpack.c.l.b16 %v309
    %v551 = vunpack.c.h.b16 %v309
    %v552 = vunpack.c.l.b16 %v310
    %v553 = vunpack.c.l.b16 %v311
    %v554 = vunpack.c.h.b16 %v311
    %v555 = vunpack.c.l.b16 %v312
    %v556 = vunpack.c.l.b16 %v313
    %v557 = vunpack.c.h.b16 %v313
    %v558 = vunpack.c.l.b16 %v314
    %v559 = vunpack.c.l.b16 %v315
    %v560 = vunpack.c.h.b16 %v315
    %v561 = vunpack.c.l.b16 %v316
    %v562 = vunpack.c.l.b16 %v317
    %v563 = vunpack.c.h.b16 %v317
    %v564 = vunpack.c.l.b16 %v318
    %v565 = vunpack.c.l.b16 %v319
    %v566 = vunpack.c.h.b16 %v319
    %v567 = vunpack.c.l.b16 %v320
    %v568 = vunpack.c.l.b16 %v321
    %v569 = vunpack.c.h.b16 %v321
    %v570 = vunpack.c.l.b16 %v322
    %v571 = vunpack.c.l.b16 %v323
    %v572 = vunpack.c.h.b16 %v323
    %v573 = vunpack.c.l.b16 %v324
    %v574 = vunpack.c.l.b16 %v325
    %v575 = vunpack.c.h.b16 %v325
    %v576 = vunpack.c.l.b16 %v326
    %v577 = vunpack.c.l.b16 %v327
    %v578 = vunpack.c.h.b16 %v327
    %v579 = vunpack.c.l.b16 %v328
    %v580 = vunpack.c.l.b16 %v329
    %v581 = vunpack.c.h.b16 %v329
    %v582 = vunpack.c.l.b16 %v330
    %v583 = vunpack.c.l.b16 %v331
    %v584 = vunpack.c.h.b16 %v331
    %v585 = vunpack.c.l.b16 %v332
    %v586 = vunpack.c.l.b16 %v333
    %v587 = vunpack.c.h.b16 %v333
    %v588 = vunpack.c.l.b16 %v334
    %v589 = vunpack.c.l.b16 %v335
    %v590 = vunpack.c.h.b16 %v335
    %v591 = vunpack.c.l.b16 %v336
    %v592 = vunpack.c.l.b16 %v337
    %v593 = vunpack.c.h.b16 %v337
    %v594 = vunpack.c.l.b16 %v338
    %v595 = vunpack.c.l.b16 %v339
    %v596 = vunpack.c.h.b16 %v339
    %v597 = vunpack.c.l.b16 %v340
    %v598 = vunpack.c.l.b16 %v341
    %v599 = vunpack.c.h.b16 %v341
    %v600 = vunpack.c.l.b16 %v342
    %v601 = vunpack.c.l.b16 %v343
    %v602 = vunpack.c.h.b16 %v343
    %v603 = vunpack.c.l.b16 %v344
    %v604 = vunpack.c.l.b16 %v345
    %v605 = vunpack.c.h.b16 %v345
    %v606 = vunpack.c.l.b16 %v346
    %v607 = vunpack.c.l.b16 %v347
    %v608 = vunpack.c.h.b16 %v347
    %v609 = vunpack.c.l.b16 %v348
    %v610 = vunpack.c.l.b16 %v349
    %v611 = vunpack.c.h.b16 %v349
    %v612 = vunpack.c.l.b16 %v350
    %v613 = vunpack.c.l.b16 %v351
    %v614 = vunpack.c.h.b16 %v351
    %v615 = vunpack.c.l.b16 %v352
    %v616 = vunpack.c.l.b16 %v353
    %v617 = vunpack.c.h.b16 %v353
    %v618 = vunpack.c.l.b16 %v354
    %v619 = vunpack.c.l.b16 %v355
    %v620 = vunpack.c.h.b16 %v355
    %v621 = vunpack.c.l.b16 %v356
    %v622 = vunpack.c.l.b16 %v357
    %v623 = vunpack.c.h.b16 %v357
    %v624 = vunpack.c.l.b16 %v358
    %v625 = vunpack.c.l.b16 %v359
    %v626 = vunpack.c.h.b16 %v359
    %v627 = vunpack.c.l.b16 %v360
    %v628 = vpack.c.b16 %v481, %v478
    %v629 = vpack.c.b16 %v482, %v479
    %v630 = vpack.c.b16 %v483, %v480
    %v631 = vpack.c.b16 %v487, %v484
    %v632 = vpack.c.b16 %v488, %v485
    %v633 = vpack.c.b16 %v489, %v486
    %v634 = vpack.c.b16 %v493, %v490
    %v635 = vpack.c.b16 %v494, %v491
    %v636 = vpack.c.b16 %v495, %v492
    %v637 = vpack.c.b16 %v499, %v496
    %v638 = vpack.c.b16 %v500, %v497
    %v639 = vpack.c.b16 %v501, %v498
    %v640 = vpack.c.b16 %v505, %v502
    %v641 = vpack.c.b16 %v506, %v503
    %v642 = vpack.c.b16 %v507, %v504
    %v643 = vpack.c.b16 %v511, %v508
    %v644 = vpack.c.b16 %v512, %v509
    %v645 = vpack.c.b16 %v513, %v510
    %v646 = vpack.c.b16 %v517, %v514
    %v647 = vpack.c.b16 %v518, %v515
    %v648 = vpack.c.b16 %v519, %v516
    %v649 = vpack.c.b16 %v523, %v520
    %v650 = vpack.c.b16 %v524, %v521
    %v651 = vpack.c.b16 %v525, %v522
    %v652 = vpack.c.b16 %v529, %v526
    %v653 = vpack.c.b16 %v530, %v527
    %v654 = vpack.c.b16 %v531, %v528
    %v655 = vpack.c.b16 %v535, %v532
    %v656 = vpack.c.b16 %v536, %v533
    %v657 = vpack.c.b16 %v537, %v534
    %v658 = vpack.c.b16 %v541, %v538
    %v659 = vpack.c.b16 %v542, %v539
    %v660 = vpack.c.b16 %v543, %v540
    %v661 = vpack.c.b16 %v547, %v544
    %v662 = vpack.c.b16 %v548, %v545
    %v663 = vpack.c.b16 %v549, %v546
    %v664 = vpack.c.b16 %v553, %v550
    %v665 = vpack.c.b16 %v554, %v551
    %v666 = vpack.c.b16 %v555, %v552
    %v667 = vpack.c.b16 %v559, %v556
    %v668 = vpack.c.b16 %v560, %v557
    %v669 = vpack.c.b16 %v561, %v558
    %v670 = vpack.c.b16 %v565, %v562
    %v671 = vpack.c.b16 %v566, %v563
    %v672 = vpack.c.b16 %v567, %v564
    %v673 = vpack.c.b16 %v571, %v568
    %v674 = vpack.c.b16 %v572, %v569
    %v675 = vpack.c.b16 %v573, %v570
    %v676 = vpack.c.b16 %v577, %v574
    %v677 = vpack.c.b16 %v578, %v575
    %v678 = vpack.c.b16 %v579, %v576
    %v679 = vpack.c.b16 %v583, %v580
    %v680 = vpack.c.b16 %v584, %v581
    %v681 = vpack.c.b16 %v585, %v582
    %v682 = vpack.c.b16 %v589, %v586
    %v683 = vpack.c.b16 %v590, %v587
    %v684 = vpack.c.b16 %v591, %v588
    %v685 = vpack.c.b16 %v595, %v592
    %v686 = vpack.c.b16 %v596, %v593
    %v687 = vpack.c.b16 %v597, %v594
    %v688 = vpack.c.b16 %v601, %v598
    %v689 = vpack.c.b16 %v602, %v599
    %v690 = vpack.c.b16 %v603, %v600
    %v691 = vpack.c.b16 %v607, %v604
    %v692 = vpack.c.b16 %v608, %v605
    %v693 = vpack.c.b16 %v609, %v606
    %v694 = vpack.c.b16 %v613, %v610
    %v695 = vpack.c.b16 %v614, %v611
    %v696 = vpack.c.b16 %v615, %v612
    %v697 = vpack.c.b16 %v619, %v616
    %v698 = vpack.c.b16 %v620, %v617
    %v699 = vpack.c.b16 %v621, %v618
    %v700 = vpack.c.b16 %v625, %v622
    %v701 = vpack.c.b16 %v626, %v623
    %v702 = vpack.c.b16 %v627, %v624
    %vm778 = vcmask 130048
    %v780 = vsel %vm778, %v260, 0
    %782 = vmatprep.subr.bf16.mxu0 %v650
    %783 = vmatpush1.bf16.msra.mxu0 %v649
    %784 = vmatprep.subr.bf16.mxu0 %v647
    %785 = vmatpush1.bf16.msra.mxu0 %v646
    %786 = vmatprep.subr.bf16.mxu0 %v644
    %787 = vmatpush1.bf16.msra.mxu0 %v643
    %788 = vmatprep.subr.bf16.mxu0 %v641
    %789 = vmatpush1.bf16.msra.mxu0 %v640
    %790 = vmatprep.subr.bf16.mxu0 %v638
    %791 = vmatpush1.bf16.msra.mxu0 %v637
    %792 = vmatprep.subr.bf16.mxu0 %v635
    %793 = vmatpush1.bf16.msra.mxu0 %v634
    %794 = vmatprep.subr.bf16.mxu0 %v632
    %795 = vmatpush1.bf16.msra.mxu0 %v631
    %796 = vmatprep.subr.bf16.mxu0 %v629
    %797 = vmatpush1.bf16.msra.mxu0 %v628
    %798 = vmatprep.subr.bf16.mxu0 %v674
    %799 = vmatpush2.bf16.msra.mxu0 %v673
    %800 = vmatprep.subr.bf16.mxu0 %v671
    %801 = vmatpush2.bf16.msra.mxu0 %v670
    %802 = vmatprep.subr.bf16.mxu0 %v668
    %803 = vmatpush2.bf16.msra.mxu0 %v667
    %804 = vmatprep.subr.bf16.mxu0 %v665
    %805 = vmatpush2.bf16.msra.mxu0 %v664
    %806 = vmatprep.subr.bf16.mxu0 %v662
    %807 = vmatpush2.bf16.msra.mxu0 %v661
    %808 = vmatprep.subr.bf16.mxu0 %v659
    %809 = vmatpush2.bf16.msra.mxu0 %v658
    %810 = vmatprep.subr.bf16.mxu0 %v656
    %811 = vmatpush2.bf16.msra.mxu0 %v655
    %812 = vmatprep.subr.bf16.mxu0 %v653
    %813 = vmatpush2.bf16.msra.mxu0 %v652
    %814 = vmatprep.mubr.bf16.mxu0 %v258
    %815 = vmatmul.mubr.bf16.gmra.mxu0 %v257
    %v816 = vpop.f32.mrf.mxu0
    %v817 = vadd.f32 %v366, %v816
    %v818 = vpop.f32.mrf.mxu0
    %v819 = vadd.f32 %v370, %v818
    %v820 = vpop.f32.mrf.mxu0
    %v821 = vadd.f32 %v366, %v820
    %v822 = vpop.f32.mrf.mxu0
    %v823 = vadd.f32 %v370, %v822
    %824 = vdwg.mxu0
    %825 = vmatprep.subr.bf16.mxu0 %v698
    %826 = vmatpush1.bf16.msra.mxu0 %v697
    %827 = vmatprep.subr.bf16.mxu0 %v695
    %828 = vmatpush1.bf16.msra.mxu0 %v694
    %829 = vmatprep.subr.bf16.mxu0 %v692
    %830 = vmatpush1.bf16.msra.mxu0 %v691
    %831 = vmatprep.subr.bf16.mxu0 %v689
    %832 = vmatpush1.bf16.msra.mxu0 %v688
    %833 = vmatprep.subr.bf16.mxu0 %v686
    %834 = vmatpush1.bf16.msra.mxu0 %v685
    %835 = vmatprep.subr.bf16.mxu0 %v683
    %836 = vmatpush1.bf16.msra.mxu0 %v682
    %837 = vmatprep.subr.bf16.mxu0 %v680
    %838 = vmatpush1.bf16.msra.mxu0 %v679
    %839 = vmatprep.subr.bf16.mxu0 %v677
    %840 = vmatpush1.bf16.msra.mxu0 %v676
    %841 = vmatprep.subr.bf16.mxu0 0
    %842 = vmatpush2.bf16.msra.mxu0 0
    %843 = vmatprep.subr.bf16.mxu0 0
    %844 = vmatpush2.bf16.msra.mxu0 0
    %845 = vmatprep.subr.bf16.mxu0 0
    %846 = vmatpush2.bf16.msra.mxu0 0
    %847 = vmatprep.subr.bf16.mxu0 0
    %848 = vmatpush2.bf16.msra.mxu0 0
    %849 = vmatprep.subr.bf16.mxu0 0
    %850 = vmatpush2.bf16.msra.mxu0 0
    %851 = vmatprep.subr.bf16.mxu0 0
    %852 = vmatpush2.bf16.msra.mxu0 0
    %853 = vmatprep.subr.bf16.mxu0 0
    %854 = vmatpush2.bf16.msra.mxu0 0
    %855 = vmatprep.subr.bf16.mxu0 %v701
    %856 = vmatpush2.bf16.msra.mxu0 %v700
    %857 = vmatprep.mubr.bf16.mxu0 %v780
    %858 = vmatmul.mubr.bf16.gmra.mxu0 %v259
    %v859 = vpop.f32.mrf.mxu0
    %v860 = vadd.f32 %v817, %v859
    %v861 = vpop.f32.mrf.mxu0
    %v862 = vadd.f32 %v819, %v861
    %v863 = vpop.f32.mrf.mxu0
    %v864 = vadd.f32 %v821, %v863
    %v865 = vpop.f32.mrf.mxu0
    %v866 = vadd.f32 %v823, %v865
    %867 = vdwg.mxu0
    %868 = vmatprep.subr.bf16.mxu0 0
    %869 = vmatpush1.bf16.msra.mxu0 %v651
    %870 = vmatprep.subr.bf16.mxu0 0
    %871 = vmatpush1.bf16.msra.mxu0 %v648
    %872 = vmatprep.subr.bf16.mxu0 0
    %873 = vmatpush1.bf16.msra.mxu0 %v645
    %874 = vmatprep.subr.bf16.mxu0 0
    %875 = vmatpush1.bf16.msra.mxu0 %v642
    %876 = vmatprep.subr.bf16.mxu0 0
    %877 = vmatpush1.bf16.msra.mxu0 %v639
    %878 = vmatprep.subr.bf16.mxu0 0
    %879 = vmatpush1.bf16.msra.mxu0 %v636
    %880 = vmatprep.subr.bf16.mxu0 0
    %881 = vmatpush1.bf16.msra.mxu0 %v633
    %882 = vmatprep.subr.bf16.mxu0 0
    %883 = vmatpush1.bf16.msra.mxu0 %v630
    %884 = vmatprep.subr.bf16.mxu0 0
    %885 = vmatpush2.bf16.msra.mxu0 %v675
    %886 = vmatprep.subr.bf16.mxu0 0
    %887 = vmatpush2.bf16.msra.mxu0 %v672
    %888 = vmatprep.subr.bf16.mxu0 0
    %889 = vmatpush2.bf16.msra.mxu0 %v669
    %890 = vmatprep.subr.bf16.mxu0 0
    %891 = vmatpush2.bf16.msra.mxu0 %v666
    %892 = vmatprep.subr.bf16.mxu0 0
    %893 = vmatpush2.bf16.msra.mxu0 %v663
    %894 = vmatprep.subr.bf16.mxu0 0
    %895 = vmatpush2.bf16.msra.mxu0 %v660
    %896 = vmatprep.subr.bf16.mxu0 0
    %897 = vmatpush2.bf16.msra.mxu0 %v657
    %898 = vmatprep.subr.bf16.mxu0 0
    %899 = vmatpush2.bf16.msra.mxu0 %v654
    %900 = vmatprep.mubr.bf16.mxu0 %v258
    %901 = vmatmul.mubr.bf16.gmra.mxu0 %v257
    %v902 = vpop.f32.mrf.mxu0
    %v903 = vadd.f32 %v374, %v902
    %v904 = vpop.f32.mrf.mxu0
    %v905 = vpop.f32.mrf.mxu0
    %v906 = vadd.f32 %v374, %v905
    %v907 = vpop.f32.mrf.mxu0
    %908 = vdwg.mxu0
    %909 = vmatprep.subr.bf16.mxu0 0
    %910 = vmatpush1.bf16.msra.mxu0 %v699
    %911 = vmatprep.subr.bf16.mxu0 0
    %912 = vmatpush1.bf16.msra.mxu0 %v696
    %913 = vmatprep.subr.bf16.mxu0 0
    %914 = vmatpush1.bf16.msra.mxu0 %v693
    %915 = vmatprep.subr.bf16.mxu0 0
    %916 = vmatpush1.bf16.msra.mxu0 %v690
    %917 = vmatprep.subr.bf16.mxu0 0
    %918 = vmatpush1.bf16.msra.mxu0 %v687
    %919 = vmatprep.subr.bf16.mxu0 0
    %920 = vmatpush1.bf16.msra.mxu0 %v684
    %921 = vmatprep.subr.bf16.mxu0 0
    %922 = vmatpush1.bf16.msra.mxu0 %v681
    %923 = vmatprep.subr.bf16.mxu0 0
    %924 = vmatpush1.bf16.msra.mxu0 %v678
    %925 = vmatprep.subr.bf16.mxu0 0
    %926 = vmatpush2.bf16.msra.mxu0 0
    %927 = vmatprep.subr.bf16.mxu0 0
    %928 = vmatpush2.bf16.msra.mxu0 0
    %929 = vmatprep.subr.bf16.mxu0 0
    %930 = vmatpush2.bf16.msra.mxu0 0
    %931 = vmatprep.subr.bf16.mxu0 0
    %932 = vmatpush2.bf16.msra.mxu0 0
    %933 = vmatprep.subr.bf16.mxu0 0
    %934 = vmatpush2.bf16.msra.mxu0 0
    %935 = vmatprep.subr.bf16.mxu0 0
    %936 = vmatpush2.bf16.msra.mxu0 0
    %937 = vmatprep.subr.bf16.mxu0 0
    %938 = vmatpush2.bf16.msra.mxu0 0
    %939 = vmatprep.subr.bf16.mxu0 0
    %940 = vmatpush2.bf16.msra.mxu0 %v702
    %941 = vmatprep.mubr.bf16.mxu0 %v780
    %942 = vmatmul.mubr.bf16.gmra.mxu0 %v259
    %v943 = vpop.f32.mrf.mxu0
    %v944 = vadd.f32 %v903, %v943
    %v945 = vpop.f32.mrf.mxu0
    %v946 = vpop.f32.mrf.mxu0
    %v947 = vadd.f32 %v906, %v946
    %v948 = vpop.f32.mrf.mxu0
    %949 = vdwg.mxu0
    %v950 = vmax.f32 %v860, 0.0
    %v951 = vmax.f32 %v862, 0.0
    %v952 = vmax.f32 %v944, 0.0
    %v953 = vmax.f32 %v864, 0.0
    %v954 = vmax.f32 %v866, 0.0
    %v955 = vmax.f32 %v947, 0.0
    %v956 = vld [vmem:[%s5] sm:$0x7]
    %v958 = vlaneseq
    %v959 = vshrl.u32 %v958, 7
    %v960 = vsub.s32 0, %v959
    %v961 = vrot.slane %v956, %v960
    %v962 = vlaneseq
    %v963 = vshrl.u32 %v962, 7
    %v964 = vsub.s32 1, %v963
    %v965 = vrot.slane %v956, %v964
    %v966 = vlaneseq
    %v967 = vshrl.u32 %v966, 7
    %v968 = vsub.s32 2, %v967
    %v969 = vrot.slane %v956, %v968
    %vm972 = vcmask 359424
    %v973 = vsel %vm972, %v969, 0
    %v976 = vsel %vm972, %v952, 0
    %v979 = vsel %vm972, %v955, 0
    %981 = vmatprep.subr.mxu0 0.0
    %982 = vmatpush1.xpose.msra.mxu0 0.0
    %983 = vmatprep.subr.mxu0 0.0
    %984 = vmatpush1.xpose.msra.mxu0 0.0
    %985 = vmatprep.subr.mxu0 0.0
    %986 = vmatpush1.xpose.msra.mxu0 0.0
    %987 = vmatprep.subr.mxu0 0.0
    %988 = vmatpush1.xpose.msra.mxu0 0.0
    %989 = vmatprep.subr.mxu0 0.0
    %990 = vmatpush1.xpose.msra.mxu0 0.0
    %991 = vmatprep.subr.mxu0 0.0
    %992 = vmatpush1.xpose.msra.mxu0 0.0
    %993 = vmatprep.subr.mxu0 0.0
    %994 = vmatpush1.xpose.msra.mxu0 0.0
    %995 = vmatprep.subr.mxu0 0.0
    %996 = vmatpush1.xpose.msra.mxu0 0.0
    %997 = vmatprep.subr.mxu0 0.0
    %998 = vmatpush1.xpose.msra.mxu0 0.0
    %999 = vmatprep.subr.mxu0 0.0
    %1000 = vmatpush1.xpose.msra.mxu0 0.0
    %1001 = vmatprep.subr.mxu0 0.0
    %1002 = vmatpush1.xpose.msra.mxu0 0.0
    %1003 = vmatprep.subr.mxu0 0.0
    %1004 = vmatpush1.xpose.msra.mxu0 0.0
    %1005 = vmatprep.subr.mxu0 0.0
    %1006 = vmatpush1.xpose.msra.mxu0 0.0
    %1007 = vmatprep.subr.mxu0 0.0
    %1008 = vmatpush1.xpose.msra.mxu0 0.0
    %1009 = vmatprep.subr.mxu0 %v954
    %1010 = vmatpush1.xpose.msra.mxu0 %v953
    %1011 = vmatprep.subr.mxu0 %v951
    %1012 = vmatpush1.xpose.msra.mxu0 %v950
    %1013 = vmatprep.subr.mxu0 0.0
    %1014 = vmatpush2.xpose.msra.mxu0 0.0
    %1015 = vmatprep.subr.mxu0 0.0
    %1016 = vmatpush2.xpose.msra.mxu0 0.0
    %1017 = vmatprep.subr.mxu0 0.0
    %1018 = vmatpush2.xpose.msra.mxu0 0.0
    %1019 = vmatprep.subr.mxu0 0.0
    %1020 = vmatpush2.xpose.msra.mxu0 0.0
    %1021 = vmatprep.subr.mxu0 0.0
    %1022 = vmatpush2.xpose.msra.mxu0 0.0
    %1023 = vmatprep.subr.mxu0 0.0
    %1024 = vmatpush2.xpose.msra.mxu0 0.0
    %1025 = vmatprep.subr.mxu0 0.0
    %1026 = vmatpush2.xpose.msra.mxu0 0.0
    %1027 = vmatprep.subr.mxu0 0.0
    %1028 = vmatpush2.xpose.msra.mxu0 0.0
    %1029 = vmatprep.subr.mxu0 0.0
    %1030 = vmatpush2.xpose.msra.mxu0 0.0
    %1031 = vmatprep.subr.mxu0 0.0
    %1032 = vmatpush2.xpose.msra.mxu0 0.0
    %1033 = vmatprep.subr.mxu0 0.0
    %1034 = vmatpush2.xpose.msra.mxu0 0.0
    %1035 = vmatprep.subr.mxu0 0.0
    %1036 = vmatpush2.xpose.msra.mxu0 0.0
    %1037 = vmatprep.subr.mxu0 0.0
    %1038 = vmatpush2.xpose.msra.mxu0 0.0
    %1039 = vmatprep.subr.mxu0 0.0
    %1040 = vmatpush2.xpose.msra.mxu0 0.0
    %1041 = vmatprep.subr.mxu0 0.0
    %1042 = vmatpush2.xpose.msra.mxu0 0.0
    %1043 = vmatprep.subr.mxu0 0.0
    %1044 = vmatpush2.xpose.msra.mxu0 0.0
    %1045 = vmatprep.mubr.f32.mxu0 %v965
    %1046 = vmatmul.mubr.f32.gmra.mxu0 %v961
    %v1047 = vpop.f32.mrf.mxu0
    %v1048 = vadd.f32 0.0, %v1047
    %v1049 = vpop.f32.mrf.mxu0
    %1050 = vdwg.mxu0
    %1051 = vmatprep.subr.mxu0 0.0
    %1052 = vmatpush1.xpose.msra.mxu0 0.0
    %1053 = vmatprep.subr.mxu0 0.0
    %1054 = vmatpush1.xpose.msra.mxu0 0.0
    %1055 = vmatprep.subr.mxu0 0.0
    %1056 = vmatpush1.xpose.msra.mxu0 0.0
    %1057 = vmatprep.subr.mxu0 0.0
    %1058 = vmatpush1.xpose.msra.mxu0 0.0
    %1059 = vmatprep.subr.mxu0 0.0
    %1060 = vmatpush1.xpose.msra.mxu0 0.0
    %1061 = vmatprep.subr.mxu0 0.0
    %1062 = vmatpush1.xpose.msra.mxu0 0.0
    %1063 = vmatprep.subr.mxu0 0.0
    %1064 = vmatpush1.xpose.msra.mxu0 0.0
    %1065 = vmatprep.subr.mxu0 0.0
    %1066 = vmatpush1.xpose.msra.mxu0 0.0
    %1067 = vmatprep.subr.mxu0 0.0
    %1068 = vmatpush1.xpose.msra.mxu0 0.0
    %1069 = vmatprep.subr.mxu0 0.0
    %1070 = vmatpush1.xpose.msra.mxu0 0.0
    %1071 = vmatprep.subr.mxu0 0.0
    %1072 = vmatpush1.xpose.msra.mxu0 0.0
    %1073 = vmatprep.subr.mxu0 0.0
    %1074 = vmatpush1.xpose.msra.mxu0 0.0
    %1075 = vmatprep.subr.mxu0 0.0
    %1076 = vmatpush1.xpose.msra.mxu0 0.0
    %1077 = vmatprep.subr.mxu0 0.0
    %1078 = vmatpush1.xpose.msra.mxu0 0.0
    %1079 = vmatprep.subr.mxu0 0.0
    %1080 = vmatpush1.xpose.msra.mxu0 %v979
    %1081 = vmatprep.subr.mxu0 0.0
    %1082 = vmatpush1.xpose.msra.mxu0 %v976
    %1083 = vmatprep.subr.mxu0 0.0
    %1084 = vmatpush2.xpose.msra.mxu0 0.0
    %1085 = vmatprep.subr.mxu0 0.0
    %1086 = vmatpush2.xpose.msra.mxu0 0.0
    %1087 = vmatprep.subr.mxu0 0.0
    %1088 = vmatpush2.xpose.msra.mxu0 0.0
    %1089 = vmatprep.subr.mxu0 0.0
    %1090 = vmatpush2.xpose.msra.mxu0 0.0
    %1091 = vmatprep.subr.mxu0 0.0
    %1092 = vmatpush2.xpose.msra.mxu0 0.0
    %1093 = vmatprep.subr.mxu0 0.0
    %1094 = vmatpush2.xpose.msra.mxu0 0.0
    %1095 = vmatprep.subr.mxu0 0.0
    %1096 = vmatpush2.xpose.msra.mxu0 0.0
    %1097 = vmatprep.subr.mxu0 0.0
    %1098 = vmatpush2.xpose.msra.mxu0 0.0
    %1099 = vmatprep.subr.mxu0 0.0
    %1100 = vmatpush2.xpose.msra.mxu0 0.0
    %1101 = vmatprep.subr.mxu0 0.0
    %1102 = vmatpush2.xpose.msra.mxu0 0.0
    %1103 = vmatprep.subr.mxu0 0.0
    %1104 = vmatpush2.xpose.msra.mxu0 0.0
    %1105 = vmatprep.subr.mxu0 0.0
    %1106 = vmatpush2.xpose.msra.mxu0 0.0
    %1107 = vmatprep.subr.mxu0 0.0
    %1108 = vmatpush2.xpose.msra.mxu0 0.0
    %1109 = vmatprep.subr.mxu0 0.0
    %1110 = vmatpush2.xpose.msra.mxu0 0.0
    %1111 = vmatprep.subr.mxu0 0.0
    %1112 = vmatpush2.xpose.msra.mxu0 0.0
    %1113 = vmatprep.subr.mxu0 0.0
    %1114 = vmatpush2.xpose.msra.mxu0 0.0
    %1115 = vmatprep.mubr.f32.mxu0 0.0
    %1116 = vmatmul.mubr.f32.gmra.mxu0 %v973
    %v1117 = vpop.f32.mrf.mxu0
    %v1118 = vadd.f32 %v1048, %v1117
    %v1119 = vpop.f32.mrf.mxu0
    %1120 = vdwg.mxu0
    %vm1121 = vcmask 122880
    %1122 = vst.msk [vmem:[#allocation10] sm:$0x1] %vm1121, %v1118
    // Predicated region
    $region42: #{tpu_custom_call.1} parent=1 // pred_check
      _
    $region43: #{tpu_custom_call.1} parent=1 // pred_check_branch
      %1124 = sbr.rel (0) target = $region45
    $region44: #{tpu_custom_call.1} parent=1 // pred_region
      %s1126 = ssub.s32 16, 16
      %1127 = vsyncadd [#allocation4], %s1126
      %s1129 = sshll.u32 [#allocation10], 4
      %s1130 = int_to_ptr.vmem [resolvable:$true] %s1129
      %1132 = dma.vmem_to_hbm [thread:$0]  %s1130, 16, %s6, [#allocation4]
    $region45: #{tpu_custom_call.1} parent=1 // pred_fallthru
      _
    // Predicated region
    $region46: #{tpu_custom_call.1} parent=1 // pred_check
      _
    $region47: #{tpu_custom_call.1} parent=1 // pred_check_branch
      %1134 = sbr.rel (0) target = $region49
    $region48: #{tpu_custom_call.1} parent=1 // pred_region
      %1135 = dma.done [#allocation4], 16
    $region49: #{tpu_custom_call.1} parent=1 // pred_fallthru
      _
    %1136 = vsyncpa [#allocation3], 1
    %1137 = vsyncpa [#allocation6], 1
    %1138 = vsyncpa [#allocation9], 1
    %1139 = vsyncpa [#allocation4], 1

</llo_original>
